<compile_context>
chip_gen: v7x
topology: tpu7x:2x2x1
jax: 0.10.0
libtpu: 0.0.40
codegen_flags: <defaults>
</compile_context>

<pallas_src>
import functools

import jax
import jax.numpy as jnp
from jax.experimental import pallas as pl
from jax.experimental.pallas import tpu as pltpu


# ---------------------------------------------------------------------------
# Stage 1 / 3: fused projection  hfa = x @ [W | W@a1 | W@a2], split in-kernel.
# ---------------------------------------------------------------------------
def _proj_kernel(x_ref, waug_ref, h_ref, f1_ref, f2_ref, *, hdim, na):
    hfa = jnp.dot(x_ref[...], waug_ref[...], preferred_element_type=jnp.float32)
    h_ref[...] = hfa[:, :hdim]                      # projected features (concat layout)
    f1_ref[...] = hfa[:, hdim:hdim + na]            # a1 . h_i  (per head)
    f2_ref[...] = hfa[:, hdim + na:hdim + 2 * na]   # a2 . h_j  (per head)


def _fused_projection(x, w_aug, hdim, na, *, tq):
    n, fin = x.shape
    daug = w_aug.shape[1]
    return pl.pallas_call(
        functools.partial(_proj_kernel, hdim=hdim, na=na),
        out_shape=(
            jax.ShapeDtypeStruct((n, hdim), jnp.float32),
            jax.ShapeDtypeStruct((n, na), jnp.float32),
            jax.ShapeDtypeStruct((n, na), jnp.float32),
        ),
        grid=(n // tq,),
        in_specs=[
            pl.BlockSpec((tq, fin), lambda i: (i, 0)),
            pl.BlockSpec((fin, daug), lambda i: (0, 0)),
        ],
        out_specs=[
            pl.BlockSpec((tq, hdim), lambda i: (i, 0)),
            pl.BlockSpec((tq, na), lambda i: (i, 0)),
            pl.BlockSpec((tq, na), lambda i: (i, 0)),
        ],
        compiler_params=pltpu.CompilerParams(dimension_semantics=("parallel",)),
    )(x, w_aug)


# ---------------------------------------------------------------------------
# Stage 2: multi-head attention, tiled over (query, key) with online rowsum.
# ---------------------------------------------------------------------------
def _heads_attn_kernel(f1_ref, f2t_ref, adj_ref, hv_ref, out_ref,
                       acc_ref, rowsum_ref, *, nheads, nhid, alpha):
    ki = pl.program_id(1)

    @pl.when(ki == 0)
    def _init():
        acc_ref[...] = jnp.zeros_like(acc_ref)
        rowsum_ref[...] = jnp.zeros_like(rowsum_ref)

    edge = adj_ref[...] != 0.0              # (TQ, TK) edge pattern
    hv = hv_ref[...]                        # (TK, H*nhid) key-node features
    f1 = f1_ref[...]                        # (TQ, H)
    f2t = f2t_ref[...]                      # (H, TK)

    for h in range(nheads):                 # static unroll -> static lane slices
        logits = f1[:, h:h + 1] + f2t[h:h + 1, :]                  # (TQ, TK)
        lrelu = jnp.where(logits >= 0, logits, alpha * logits)     # LeakyReLU
        e = jnp.where(edge, jnp.exp(-lrelu), 0.0)                  # masked, no inf*0
        rowsum_ref[:, h:h + 1] += jnp.sum(e, axis=1, keepdims=True)
        acc_ref[:, h * nhid:(h + 1) * nhid] += jnp.dot(
            e, hv[:, h * nhid:(h + 1) * nhid], preferred_element_type=jnp.float32)

    @pl.when(ki == pl.num_programs(1) - 1)
    def _finalize():
        for h in range(nheads):
            inv = pl.reciprocal(rowsum_ref[:, h:h + 1], approx=True)   # (TQ, 1), EUP
            hp = acc_ref[:, h * nhid:(h + 1) * nhid] * inv
            # ELU (concat=True heads). TODO(synk): jnp.expm1 would be a touch more
            # precise near 0; exp-1 kept for maximally portable Mosaic lowering.
            out_ref[:, h * nhid:(h + 1) * nhid] = jnp.where(
                hp > 0, hp, jnp.exp(jnp.minimum(hp, 0.0)) - 1.0)


# ---------------------------------------------------------------------------
# Stage 4: output attention layer (concat=False) + F.relu + log_softmax(dim=1).
# ---------------------------------------------------------------------------
def _out_attn_kernel(f1_ref, f2t_ref, adj_ref, hv_ref, out_ref,
                     acc_ref, rowsum_ref, *, alpha):
    ki = pl.program_id(1)

    @pl.when(ki == 0)
    def _init():
        acc_ref[...] = jnp.zeros_like(acc_ref)
        rowsum_ref[...] = jnp.zeros_like(rowsum_ref)

    logits = f1_ref[...] + f2t_ref[...]                 # (TQ,1)+(1,TK) -> (TQ,TK)
    lrelu = jnp.where(logits >= 0, logits, alpha * logits)
    e = jnp.where(adj_ref[...] != 0.0, jnp.exp(-lrelu), 0.0)
    rowsum_ref[...] += jnp.sum(e, axis=1, keepdims=True)
    acc_ref[...] += jnp.dot(e, hv_ref[...], preferred_element_type=jnp.float32)

    @pl.when(ki == pl.num_programs(1) - 1)
    def _finalize():
        hp = acc_ref[...] * pl.reciprocal(rowsum_ref[...], approx=True)  # no ELU here
        y = jnp.maximum(hp, 0.0)                                         # F.relu
        m = jnp.max(y, axis=1, keepdims=True)                            # log_softmax
        z = y - m
        lse = jnp.log(jnp.sum(jnp.exp(z), axis=1, keepdims=True))
        out_ref[...] = z - lse


# ---------------------------------------------------------------------------
# Wrapper
# ---------------------------------------------------------------------------
def spgat_forward(x, adj, params, *, alpha, tq=128, tk=128):
    n, nfeat = x.shape
    w_heads = params["W_heads"]     # (H, nfeat, nhid)
    a1_heads = params["a1_heads"]   # (H, nhid, 1)
    a2_heads = params["a2_heads"]   # (H, nhid, 1)
    w_out = params["W_out"]         # (H*nhid, nclass)
    a1_out = params["a1_out"]       # (nclass, 1)
    a2_out = params["a2_out"]       # (nclass, 1)
    nheads, _, nhid = w_heads.shape
    nclass = w_out.shape[1]
    hdim = nheads * nhid

    tq = min(tq, n)
    tk = min(tk, n)
    assert n % tq == 0 and n % tk == 0, "demo assumes N divisible by tile sizes"

    # Parameter-side glue (tiny): batch heads + fold a1/a2 into the weight matmul.
    w_cat = jnp.transpose(w_heads, (1, 0, 2)).reshape(nfeat, hdim)   # concat layout
    wa1 = jnp.einsum("hfk,hk->fh", w_heads, a1_heads[..., 0])        # (nfeat, H)
    wa2 = jnp.einsum("hfk,hk->fh", w_heads, a2_heads[..., 0])        # (nfeat, H)
    w_aug1 = jnp.concatenate([w_cat, wa1, wa2], axis=1)              # (nfeat, hdim+2H)
    w_aug2 = jnp.concatenate([w_out, w_out @ a1_out, w_out @ a2_out], axis=1)

    # Stage 1: batched projection for all heads (h_cat, f1, f2 from one matmul).
    h_cat, f1, f2 = _fused_projection(x, w_aug1, hdim, nheads, tq=tq)
    f2t = f2.T                                                       # (H, N), tiny

    grid = (n // tq, n // tk)
    dimsem = ("parallel", "arbitrary")

    # Stage 2: multi-head attention -> directly in (N, H*nhid) concat layout.
    x2 = pl.pallas_call(
        functools.partial(_heads_attn_kernel, nheads=nheads, nhid=nhid, alpha=alpha),
        out_shape=jax.ShapeDtypeStruct((n, hdim), jnp.float32),
        grid=grid,
        in_specs=[
            pl.BlockSpec((tq, nheads), lambda qi, ki: (qi, 0)),   # f1   (query rows)
            pl.BlockSpec((nheads, tk), lambda qi, ki: (0, ki)),   # f2^T (key cols)
            pl.BlockSpec((tq, tk), lambda qi, ki: (qi, ki)),      # adj tile
            pl.BlockSpec((tk, hdim), lambda qi, ki: (ki, 0)),     # h values (keys)
        ],
        out_specs=pl.BlockSpec((tq, hdim), lambda qi, ki: (qi, 0)),
        scratch_shapes=[
            pltpu.VMEM((tq, hdim), jnp.float32),     # acc: sum_j e_ij h_j (all heads)
            pltpu.VMEM((tq, nheads), jnp.float32),   # rowsum per head
        ],
        compiler_params=pltpu.CompilerParams(dimension_semantics=dimsem),
    )(f1, f2t, adj, h_cat)

    # Stage 3: projection for the output attention layer.
    h2, f1o, f2o = _fused_projection(x2, w_aug2, nclass, 1, tq=tq)
    f2ot = f2o.T                                                     # (1, N)

    # Stage 4: output attention + relu + log_softmax, tiled the same way.
    out = pl.pallas_call(
        functools.partial(_out_attn_kernel, alpha=alpha),
        out_shape=jax.ShapeDtypeStruct((n, nclass), jnp.float32),
        grid=grid,
        in_specs=[
            pl.BlockSpec((tq, 1), lambda qi, ki: (qi, 0)),
            pl.BlockSpec((1, tk), lambda qi, ki: (0, ki)),
            pl.BlockSpec((tq, tk), lambda qi, ki: (qi, ki)),
            pl.BlockSpec((tk, nclass), lambda qi, ki: (ki, 0)),
        ],
        out_specs=pl.BlockSpec((tq, nclass), lambda qi, ki: (qi, 0)),
        scratch_shapes=[
            pltpu.VMEM((tq, nclass), jnp.float32),
            pltpu.VMEM((tq, 1), jnp.float32),
        ],
        compiler_params=pltpu.CompilerParams(dimension_semantics=dimsem),
    )(f1o, f2ot, adj, h2)
    return out


if __name__ == "__main__":
    # Small deterministic problem: 256 nodes so the (TQ, TK)=(128, 128) tiling is real.
    N, nfeat, nhid, nclass, nheads = 256, 32, 16, 8, 4
    alpha = 0.2  # LeakyReLU negative slope

    key = jax.random.PRNGKey(0)
    ks = jax.random.split(key, 8)

    x = jax.random.normal(ks[0], (N, nfeat), dtype=jnp.float32)
    adj = (jax.random.uniform(ks[1], (N, N)) < 0.1).astype(jnp.float32)
    adj = jnp.maximum(adj, jnp.eye(N, dtype=jnp.float32))   # self-loops -> rowsum > 0

    params = {
        "W_heads": 0.1 * jax.random.normal(ks[2], (nheads, nfeat, nhid), jnp.float32),
        "a1_heads": 0.1 * jax.random.normal(ks[3], (nheads, nhid, 1), jnp.float32),
        "a2_heads": 0.1 * jax.random.normal(ks[4], (nheads, nhid, 1), jnp.float32),
        "W_out": 0.1 * jax.random.normal(ks[5], (nheads * nhid, nclass), jnp.float32),
        "a1_out": 0.1 * jax.random.normal(ks[6], (nclass, 1), jnp.float32),
        "a2_out": 0.1 * jax.random.normal(ks[7], (nclass, 1), jnp.float32),
    }

    out = spgat_forward(x, adj, params, alpha=alpha)
    out = jax.block_until_ready(out)

    assert out.shape == (N, nclass), out.shape
    assert bool(jnp.all(jnp.isfinite(out)))
    # log_softmax rows must sum to 1 in probability space.
    assert bool(jnp.allclose(jnp.sum(jnp.exp(out), axis=1), 1.0, atol=1e-4))
    print("KERNEL_OK")
</pallas_src>

<mosaic_0001>
module attributes {stable_mosaic.version = 11 : i64} {
  func.func @_proj_kernel(%arg0: i32, %arg1: memref<128x32xf32, #tpu.memory_space<vmem>>, %arg2: memref<32x72xf32, #tpu.memory_space<vmem>>, %arg3: memref<128x64xf32, #tpu.memory_space<vmem>>, %arg4: memref<128x4xf32, #tpu.memory_space<vmem>>, %arg5: memref<128x4xf32, #tpu.memory_space<vmem>>) attributes {dimension_semantics = [#tpu.dimension_semantics<parallel>], iteration_bounds = array<i64: 2>, scalar_prefetch = 0 : i64, scratch_operands = 0 : i64, tpu.core_type = #tpu.core_type<tc>, window_params = [{transform_indices = @transform_0, window_bounds = array<i64: 128, 32>}, {pipeline_mode = #tpu.pipeline_mode<synchronous>, transform_indices = @transform_1, window_bounds = array<i64: 32, 72>}, {transform_indices = @transform_2, window_bounds = array<i64: 128, 64>}, {transform_indices = @transform_3, window_bounds = array<i64: 128, 4>}, {transform_indices = @transform_4, window_bounds = array<i64: 128, 4>}]} {
    %c0 = arith.constant 0 : index
    %c0_0 = arith.constant 0 : index
    %0 = vector.load %arg1[%c0, %c0_0] : memref<128x32xf32, #tpu.memory_space<vmem>>, vector<128x32xf32>
    %c0_1 = arith.constant 0 : index
    %c0_2 = arith.constant 0 : index
    %1 = vector.load %arg2[%c0_1, %c0_2] : memref<32x72xf32, #tpu.memory_space<vmem>>, vector<32x72xf32>
    %cst = arith.constant dense<0.000000e+00> : vector<128x72xf32>
    %2 = tpu.matmul %0, %1, %cst {dimension_numbers = #tpu.dot_dimension_numbers<[1], [0], [0], [1], [0, 0, 1, 1], [], []>} : vector<128x32xf32>, vector<32x72xf32>, vector<128x72xf32> -> vector<128x72xf32>
    %3 = vector.extract_strided_slice %2 {offsets = [0, 0], sizes = [128, 64], strides = [1, 1]} : vector<128x72xf32> to vector<128x64xf32>
    %c0_3 = arith.constant 0 : index
    %c0_4 = arith.constant 0 : index
    %4 = vector.load %arg3[%c0_3, %c0_4] : memref<128x64xf32, #tpu.memory_space<vmem>>, vector<128x64xf32>
    tpu.vector_store %arg3[%c0_3, %c0_4], %3 {strides = array<i32>} : memref<128x64xf32, #tpu.memory_space<vmem>>, vector<128x64xf32>,
    %5 = vector.extract_strided_slice %2 {offsets = [0, 64], sizes = [128, 4], strides = [1, 1]} : vector<128x72xf32> to vector<128x4xf32>
    %c0_5 = arith.constant 0 : index
    %c0_6 = arith.constant 0 : index
    %6 = vector.load %arg4[%c0_5, %c0_6] : memref<128x4xf32, #tpu.memory_space<vmem>>, vector<128x4xf32>
    tpu.vector_store %arg4[%c0_5, %c0_6], %5 {strides = array<i32>} : memref<128x4xf32, #tpu.memory_space<vmem>>, vector<128x4xf32>,
    %7 = vector.extract_strided_slice %2 {offsets = [0, 68], sizes = [128, 4], strides = [1, 1]} : vector<128x72xf32> to vector<128x4xf32>
    %c0_7 = arith.constant 0 : index
    %c0_8 = arith.constant 0 : index
    %8 = vector.load %arg5[%c0_7, %c0_8] : memref<128x4xf32, #tpu.memory_space<vmem>>, vector<128x4xf32>
    tpu.vector_store %arg5[%c0_7, %c0_8], %7 {strides = array<i32>} : memref<128x4xf32, #tpu.memory_space<vmem>>, vector<128x4xf32>,
    return
  }
  func.func @transform_0(%arg0: i32) -> (i32, i32) {
    %c0_i32 = arith.constant 0 : i32
    %c0_i32_0 = arith.constant 0 : i32
    return %arg0, %c0_i32 : i32, i32
  }
  func.func @transform_1(%arg0: i32) -> (i32, i32) {
    %c0_i32 = arith.constant 0 : i32
    %c0_i32_0 = arith.constant 0 : i32
    %c0_i32_1 = arith.constant 0 : i32
    return %c0_i32, %c0_i32_0 : i32, i32
  }
  func.func @transform_2(%arg0: i32) -> (i32, i32) {
    %c0_i32 = arith.constant 0 : i32
    %c0_i32_0 = arith.constant 0 : i32
    return %arg0, %c0_i32 : i32, i32
  }
  func.func @transform_3(%arg0: i32) -> (i32, i32) {
    %c0_i32 = arith.constant 0 : i32
    %c0_i32_0 = arith.constant 0 : i32
    return %arg0, %c0_i32 : i32, i32
  }
  func.func @transform_4(%arg0: i32) -> (i32, i32) {
    %c0_i32 = arith.constant 0 : i32
    %c0_i32_0 = arith.constant 0 : i32
    return %arg0, %c0_i32 : i32, i32
  }
}

</mosaic_0001>

<llo_original>
// kernel: tpu_custom_call.1
$region0: #{tpu_custom_call.1}
  #allocation0 [shape = 'u32[]', space=smem, size = 0x4, offset = 0x4, fixed_abs, tag = 'smem constant byte address 0x4 - core index']
  #allocation1 [shape = 'u32[144,128]{1,0:T(1,128)}', space=vmem, size = 0x12000, scoped, tag = 'internal scratch']
  %s0 = inlined_call_operand.vmem [shape: f32[256,32], index: 0, kind: input, shape index: {}]
  %s1 = inlined_call_operand.vmem [shape: f32[32,72], index: 1, kind: input, shape index: {}]
  %s2 = inlined_call_operand.vmem [shape: f32[256,64], index: 2, kind: output, shape index: {0}]
  %s3 = inlined_call_operand.vmem [shape: f32[256,4], index: 3, kind: output, shape index: {1}]
  %s4 = inlined_call_operand.vmem [shape: f32[256,4], index: 4, kind: output, shape index: {2}]
  %5 = xla_tuple %s2, %s3, %s4
  %s6 = sld [smem:[#allocation0]]
  $region57: #{tpu_custom_call.1} parent=0
    _
  %s8 = ssub.s32 1, %s6
  %s9 = scalar_select 0, %s8, %s6
  loop: start=0, step=1, limit=4
  $region2: #{tpu_custom_call.1} parent=0 // loop_pre_header
    _
  $region3: #{tpu_custom_call.1} parent=0 // loop_header
    %s11 = sphi 0, %s15
    %p12 = scmp.ge.s32.totalorder %s11, 4
    %s21 = sphi 0, %s23
    %s24 = sphi 0, %s21
    %s25 = sphi 0, %s24
    %s41 = sphi 0, %s25
    %s45 = sphi 0, %s45
    %s47 = sphi 0, %s45
    %s48 = sphi 0, %s47
    %s62 = sphi 0, %s48
    %s68 = sphi 0, %s70
    %s71 = sphi 0, %s68
    %s72 = sphi 0, %s71
    %s88 = sphi 0, %s72
    %s94 = sphi 0, %s96
    %s97 = sphi 0, %s94
    %s98 = sphi 0, %s97
    %s114 = sphi 0, %s98
    %s120 = sphi 0, %s122
    %s123 = sphi 0, %s120
    %s124 = sphi 0, %s123
    %s140 = sphi 0, %s124
  $region4: #{tpu_custom_call.1} parent=0 // loop_header_branch
    %14 = sbr.rel (%p12) target = $region8
  $region5: #{tpu_custom_call.1} parent=0 // loop_body
    %s16 = ssub.s32 %s11, 1
    %s17 = ssub.s32 %s11, 2
    %s18 = sadd.s32 %s11, 1
    %s19 = ssub.s32 %s11, %s18
    %p20 = scmp.eq.s32.totalorder %s19, 0
    %s22 = sadd.s32 %s21, 1
    %s23 = scalar_select %p20, %s21, %s22
    %p26 = pneg %p20
    %p27 = scmp.eq.s32.totalorder %s11, 1
    %p28 = por %p26, %p27
    %p29 = scmp.ne.s32.totalorder %s21, %s24
    %p30 = scmp.eq.s32.totalorder %s11, 0
    %p31 = por %p29, %p30
    %p32 = scmp.ne.s32.totalorder %s21, %s24
    %p33 = scmp.eq.s32.totalorder %s16, 1
    %p34 = por %p32, %p33
    %p35 = scmp.ne.s32.totalorder %s24, %s25
    %p36 = scmp.eq.s32.totalorder %s16, 0
    %p37 = por %p35, %p36
    %p38 = scmp.ne.s32.totalorder %s24, %s25
    %p39 = scmp.eq.s32.totalorder %s17, 1
    %p40 = por %p38, %p39
    %p42 = scmp.ne.s32.totalorder %s25, %s41
    %p43 = scmp.eq.s32.totalorder %s17, 0
    %p44 = por %p42, %p43
    %s46 = sadd.s32 %s45, 1
    %p49 = scmp.eq.s32.totalorder %s11, 1
    %p50 = scmp.ne.s32.totalorder %s45, %s47
    %p51 = scmp.eq.s32.totalorder %s11, 0
    %p52 = por %p50, %p51
    %p53 = scmp.ne.s32.totalorder %s45, %s47
    %p54 = scmp.eq.s32.totalorder %s16, 1
    %p55 = por %p53, %p54
    %p56 = scmp.ne.s32.totalorder %s47, %s48
    %p57 = scmp.eq.s32.totalorder %s16, 0
    %p58 = por %p56, %p57
    %p59 = scmp.ne.s32.totalorder %s47, %s48
    %p60 = scmp.eq.s32.totalorder %s17, 1
    %p61 = por %p59, %p60
    %p63 = scmp.ne.s32.totalorder %s48, %s62
    %p64 = scmp.eq.s32.totalorder %s17, 0
    %p65 = por %p63, %p64
    %s66 = ssub.s32 %s11, %s18
    %p67 = scmp.eq.s32.totalorder %s66, 0
    %s69 = sadd.s32 %s68, 1
    %s70 = scalar_select %p67, %s68, %s69
    %p73 = pneg %p67
    %p74 = scmp.eq.s32.totalorder %s11, 1
    %p75 = por %p73, %p74
    %p76 = scmp.ne.s32.totalorder %s68, %s71
    %p77 = scmp.eq.s32.totalorder %s11, 0
    %p78 = por %p76, %p77
    %p79 = scmp.ne.s32.totalorder %s68, %s71
    %p80 = scmp.eq.s32.totalorder %s16, 1
    %p81 = por %p79, %p80
    %p82 = scmp.ne.s32.totalorder %s71, %s72
    %p83 = scmp.eq.s32.totalorder %s16, 0
    %p84 = por %p82, %p83
    %p85 = scmp.ne.s32.totalorder %s71, %s72
    %p86 = scmp.eq.s32.totalorder %s17, 1
    %p87 = por %p85, %p86
    %p89 = scmp.ne.s32.totalorder %s72, %s88
    %p90 = scmp.eq.s32.totalorder %s17, 0
    %p91 = por %p89, %p90
    %s92 = ssub.s32 %s11, %s18
    %p93 = scmp.eq.s32.totalorder %s92, 0
    %s95 = sadd.s32 %s94, 1
    %s96 = scalar_select %p93, %s94, %s95
    %p99 = pneg %p93
    %p100 = scmp.eq.s32.totalorder %s11, 1
    %p101 = por %p99, %p100
    %p102 = scmp.ne.s32.totalorder %s94, %s97
    %p103 = scmp.eq.s32.totalorder %s11, 0
    %p104 = por %p102, %p103
    %p105 = scmp.ne.s32.totalorder %s94, %s97
    %p106 = scmp.eq.s32.totalorder %s16, 1
    %p107 = por %p105, %p106
    %p108 = scmp.ne.s32.totalorder %s97, %s98
    %p109 = scmp.eq.s32.totalorder %s16, 0
    %p110 = por %p108, %p109
    %p111 = scmp.ne.s32.totalorder %s97, %s98
    %p112 = scmp.eq.s32.totalorder %s17, 1
    %p113 = por %p111, %p112
    %p115 = scmp.ne.s32.totalorder %s98, %s114
    %p116 = scmp.eq.s32.totalorder %s17, 0
    %p117 = por %p115, %p116
    %s118 = ssub.s32 %s11, %s18
    %p119 = scmp.eq.s32.totalorder %s118, 0
    %s121 = sadd.s32 %s120, 1
    %s122 = scalar_select %p119, %s120, %s121
    %p125 = pneg %p119
    %p126 = scmp.eq.s32.totalorder %s11, 1
    %p127 = por %p125, %p126
    %p128 = scmp.ne.s32.totalorder %s120, %s123
    %p129 = scmp.eq.s32.totalorder %s11, 0
    %p130 = por %p128, %p129
    %p131 = scmp.ne.s32.totalorder %s120, %s123
    %p132 = scmp.eq.s32.totalorder %s16, 1
    %p133 = por %p131, %p132
    %p134 = scmp.ne.s32.totalorder %s123, %s124
    %p135 = scmp.eq.s32.totalorder %s16, 0
    %p136 = por %p134, %p135
    %p137 = scmp.ne.s32.totalorder %s123, %s124
    %p138 = scmp.eq.s32.totalorder %s17, 1
    %p139 = por %p137, %p138
    %p141 = scmp.ne.s32.totalorder %s124, %s140
    %p142 = scmp.eq.s32.totalorder %s17, 0
    %p143 = por %p141, %p142
    %p144 = scmp.le.s32.totalorder 1, %s11
    %p145 = scmp.lt.s32.totalorder %s11, 3
    %p146 = pnand %p144, %p145
    %p147 = pneg %p146
    // Predicated region
    $region9: #{tpu_custom_call.1} parent=5 // pred_check
      _
    $region10: #{tpu_custom_call.1} parent=5 // pred_check_branch
      %149 = sbr.rel (%p146) target = $region12
    $region11: #{tpu_custom_call.1} parent=5 // pred_region
      %s150 = ssub.s32 %s11, 1
      // Predicated region
      $region13: #{tpu_custom_call.1} parent=11 // pred_check
        %p151 = pneg %p58
      $region14: #{tpu_custom_call.1} parent=11 // pred_check_branch
        %153 = sbr.rel (%p151) target = $region16
      $region15: #{tpu_custom_call.1} parent=11 // pred_region
        _
      $region16: #{tpu_custom_call.1} parent=11 // pred_fallthru
        _
    $region12: #{tpu_custom_call.1} parent=5 // pred_fallthru
      _
    %p154 = scmp.lt.s32.totalorder %s11, 2
    // Predicated region
    $region17: #{tpu_custom_call.1} parent=5 // pred_check
      %p155 = pneg %p154
    $region18: #{tpu_custom_call.1} parent=5 // pred_check_branch
      %157 = sbr.rel (%p155) target = $region20
    $region19: #{tpu_custom_call.1} parent=5 // pred_region
      // Predicated region
      $region21: #{tpu_custom_call.1} parent=19 // pred_check
        %p158 = pneg %p31
      $region22: #{tpu_custom_call.1} parent=19 // pred_check_branch
        %160 = sbr.rel (%p158) target = $region24
      $region23: #{tpu_custom_call.1} parent=19 // pred_region
        %s161 = smul.u32 16, %s11
        %p162 = scmp.lt.s32.totalorder %s161, 31
        %s163 = scalar_select %p162, %s161, 31
        %s164 = smul.addr %s163, 8
        %s165 = scalar_lea.vmem %s0, %s164
        %s166 = smul.u32 16, %s11
      $region24: #{tpu_custom_call.1} parent=19 // pred_fallthru
        _
    $region20: #{tpu_custom_call.1} parent=5 // pred_fallthru
      _
    %p167 = scmp.le.s32.totalorder 1, %s11
    %p168 = scmp.lt.s32.totalorder %s11, 3
    %p169 = pnand %p167, %p168
    %p170 = pneg %p169
    // Predicated region
    $region25: #{tpu_custom_call.1} parent=5 // pred_check
      _
    $region26: #{tpu_custom_call.1} parent=5 // pred_check_branch
      %172 = sbr.rel (%p169) target = $region28
    $region27: #{tpu_custom_call.1} parent=5 // pred_region
      %s173 = ssub.s32 %s11, 1
      %s174 = smul.u32 16, %s16
      %p175 = scmp.lt.s32.totalorder %s174, 31
      %s176 = scalar_select %p175, %s174, 31
      %s177 = smul.addr %s176, 8
      %s178 = scalar_lea.vmem %s0, %s177
      %p179 = pneg %p37
      %p180 = pneg %p34
      %p181 = pneg %p58
      %p182 = pneg %p55
      %p183 = pneg %p84
      %p184 = pneg %p81
      %s185 = smul.u32 16, %s16
      %p186 = scmp.lt.s32.totalorder %s185, 31
      %s187 = scalar_select %p186, %s185, 31
      %s188 = smul.addr %s187, 8
      %s189 = scalar_lea.vmem %s2, %s188
      %p190 = pneg %p110
      %p191 = pneg %p107
      %s192 = smul.u32 16, %s16
      %p193 = scmp.lt.s32.totalorder %s192, 31
      %s194 = scalar_select %p193, %s192, 31
      %s195 = smul.addr %s194, 8
      %s196 = scalar_lea.vmem %s3, %s195
      %p197 = pneg %p136
      %p198 = pneg %p133
      %s199 = smul.u32 16, %s16
      %p200 = scmp.lt.s32.totalorder %s199, 31
      %s201 = scalar_select %p200, %s199, 31
      %s202 = smul.addr %s201, 8
      %s203 = scalar_lea.vmem %s4, %s202
      %s204 = smul.u32 16, %s16
      %p205 = scmp.lt.s32.totalorder %s204, 31
      %s206 = scalar_select %p205, %s204, 31
      %s207 = smul.addr %s206, 8
      %s208 = scalar_lea.vmem %s0, %s207
      %s209 = smul.u32 16, %s16
      %s210 = smul.u32 16, %s16
      %p211 = scmp.lt.s32.totalorder %s210, 31
      %s212 = scalar_select %p211, %s210, 31
      %s213 = smul.addr %s212, 8
      %s214 = scalar_lea.vmem %s2, %s213
      %s215 = smul.u32 16, %s16
      %s216 = smul.u32 16, %s16
      %p217 = scmp.lt.s32.totalorder %s216, 31
      %s218 = scalar_select %p217, %s216, 31
      %s219 = smul.addr %s218, 8
      %s220 = scalar_lea.vmem %s3, %s219
      %s221 = smul.u32 16, %s16
      %s222 = smul.u32 16, %s16
      %p223 = scmp.lt.s32.totalorder %s222, 31
      %s224 = scalar_select %p223, %s222, 31
      %s225 = smul.addr %s224, 8
      %s226 = scalar_lea.vmem %s4, %s225
      %s227 = smul.u32 16, %s16
      %v228 = vld [vmem:[%s208] sm:$0xff]
      %v229 = vld [vmem:[%s208 + $0x8] sm:$0xff]
      %v230 = vld [vmem:[%s208 + $0x10] sm:$0xff]
      %v231 = vld [vmem:[%s208 + $0x18] sm:$0xff]
      %v232 = vld [vmem:[%s208 + $0x20] sm:$0xff]
      %v233 = vld [vmem:[%s208 + $0x28] sm:$0xff]
      %v234 = vld [vmem:[%s208 + $0x30] sm:$0xff]
      %v235 = vld [vmem:[%s208 + $0x38] sm:$0xff]
      %v236 = vld [vmem:[%s208 + $0x40] sm:$0xff]
      %v237 = vld [vmem:[%s208 + $0x48] sm:$0xff]
      %v238 = vld [vmem:[%s208 + $0x50] sm:$0xff]
      %v239 = vld [vmem:[%s208 + $0x58] sm:$0xff]
      %v240 = vld [vmem:[%s208 + $0x60] sm:$0xff]
      %v241 = vld [vmem:[%s208 + $0x68] sm:$0xff]
      %v242 = vld [vmem:[%s208 + $0x70] sm:$0xff]
      %v243 = vld [vmem:[%s208 + $0x78] sm:$0xff]
      %v244 = vld [vmem:[%s1] sm:$0xff]
      %v245 = vld [vmem:[%s1 + $0x8] sm:$0xff]
      %v246 = vld [vmem:[%s1 + $0x10] sm:$0xff]
      %v247 = vld [vmem:[%s1 + $0x18] sm:$0xff]
      %vm248 = vcmask 261120
      %v250 = vsel %vm248, %v228, 0
      %v253 = vsel %vm248, %v229, 0
      %v256 = vsel %vm248, %v230, 0
      %v259 = vsel %vm248, %v231, 0
      %v262 = vsel %vm248, %v232, 0
      %v265 = vsel %vm248, %v233, 0
      %v268 = vsel %vm248, %v234, 0
      %v271 = vsel %vm248, %v235, 0
      %v274 = vsel %vm248, %v236, 0
      %v277 = vsel %vm248, %v237, 0
      %v280 = vsel %vm248, %v238, 0
      %v283 = vsel %vm248, %v239, 0
      %v286 = vsel %vm248, %v240, 0
      %v289 = vsel %vm248, %v241, 0
      %v292 = vsel %vm248, %v242, 0
      %v295 = vsel %vm248, %v243, 0
      %297 = vmatprep.subr.mxu0 0.0
      %298 = vmatpush1.msra.mxu0 %v244
      %299 = vmatprep.subr.mxu0 0.0
      %300 = vmatpush1.msra.mxu0 %v245
      %301 = vmatprep.subr.mxu0 0.0
      %302 = vmatpush1.msra.mxu0 %v246
      %303 = vmatprep.subr.mxu0 0.0
      %304 = vmatpush1.msra.mxu0 %v247
      %305 = vmatprep.subr.mxu0 0.0
      %306 = vmatpush1.msra.mxu0 0.0
      %307 = vmatprep.subr.mxu0 0.0
      %308 = vmatpush1.msra.mxu0 0.0
      %309 = vmatprep.subr.mxu0 0.0
      %310 = vmatpush1.msra.mxu0 0.0
      %311 = vmatprep.subr.mxu0 0.0
      %312 = vmatpush1.msra.mxu0 0.0
      %313 = vmatprep.subr.mxu0 0.0
      %314 = vmatpush1.msra.mxu0 0.0
      %315 = vmatprep.subr.mxu0 0.0
      %316 = vmatpush1.msra.mxu0 0.0
      %317 = vmatprep.subr.mxu0 0.0
      %318 = vmatpush1.msra.mxu0 0.0
      %319 = vmatprep.subr.mxu0 0.0
      %320 = vmatpush1.msra.mxu0 0.0
      %321 = vmatprep.subr.mxu0 0.0
      %322 = vmatpush1.msra.mxu0 0.0
      %323 = vmatprep.subr.mxu0 0.0
      %324 = vmatpush1.msra.mxu0 0.0
      %325 = vmatprep.subr.mxu0 0.0
      %326 = vmatpush1.msra.mxu0 0.0
      %327 = vmatprep.subr.mxu0 0.0
      %328 = vmatpush1.msra.mxu0 0.0
      %329 = vmatprep.subr.mxu0 0.0
      %330 = vmatpush1.msra.mxu0 0.0
      %331 = vmatprep.subr.mxu0 0.0
      %332 = vmatpush1.msra.mxu0 0.0
      %333 = vmatprep.subr.mxu0 0.0
      %334 = vmatpush1.msra.mxu0 0.0
      %335 = vmatprep.subr.mxu0 0.0
      %336 = vmatpush1.msra.mxu0 0.0
      %337 = vmatprep.subr.mxu0 0.0
      %338 = vmatpush1.msra.mxu0 0.0
      %339 = vmatprep.subr.mxu0 0.0
      %340 = vmatpush1.msra.mxu0 0.0
      %341 = vmatprep.subr.mxu0 0.0
      %342 = vmatpush1.msra.mxu0 0.0
      %343 = vmatprep.subr.mxu0 0.0
      %344 = vmatpush1.msra.mxu0 0.0
      %345 = vmatprep.subr.mxu0 0.0
      %346 = vmatpush1.msra.mxu0 0.0
      %347 = vmatprep.subr.mxu0 0.0
      %348 = vmatpush1.msra.mxu0 0.0
      %349 = vmatprep.subr.mxu0 0.0
      %350 = vmatpush1.msra.mxu0 0.0
      %351 = vmatprep.subr.mxu0 0.0
      %352 = vmatpush1.msra.mxu0 0.0
      %353 = vmatprep.subr.mxu0 0.0
      %354 = vmatpush1.msra.mxu0 0.0
      %355 = vmatprep.subr.mxu0 0.0
      %356 = vmatpush1.msra.mxu0 0.0
      %357 = vmatprep.subr.mxu0 0.0
      %358 = vmatpush1.msra.mxu0 0.0
      %359 = vmatprep.subr.mxu0 0.0
      %360 = vmatpush1.msra.mxu0 0.0
      %361 = vmatprep.mubr.f32.mxu0 0.0
      %362 = vmatmul.mubr.f32.gmra.mrb[0].mxu0 %v250
      %v363 = vpop.f32.mrb[0].mxu0
      %v364 = vadd.f32 0.0, %v363
      %v365 = vpop.f32.mrb[0].mxu0
      %366 = vmatprep.mubr.f32.mxu0 0.0
      %367 = vmatmul.mubr.f32.gmra.mrb[0].mxu0 %v253
      %v368 = vpop.f32.mrb[0].mxu0
      %v369 = vadd.f32 0.0, %v368
      %v370 = vpop.f32.mrb[0].mxu0
      %371 = vmatprep.mubr.f32.mxu0 0.0
      %372 = vmatmul.mubr.f32.gmra.mrb[0].mxu0 %v256
      %v373 = vpop.f32.mrb[0].mxu0
      %v374 = vadd.f32 0.0, %v373
      %v375 = vpop.f32.mrb[0].mxu0
      %376 = vmatprep.mubr.f32.mxu0 0.0
      %377 = vmatmul.mubr.f32.gmra.mrb[0].mxu0 %v259
      %v378 = vpop.f32.mrb[0].mxu0
      %v379 = vadd.f32 0.0, %v378
      %v380 = vpop.f32.mrb[0].mxu0
      %381 = vmatprep.mubr.f32.mxu0 0.0
      %382 = vmatmul.mubr.f32.gmra.mrb[0].mxu0 %v262
      %v383 = vpop.f32.mrb[0].mxu0
      %v384 = vadd.f32 0.0, %v383
      %v385 = vpop.f32.mrb[0].mxu0
      %386 = vmatprep.mubr.f32.mxu0 0.0
      %387 = vmatmul.mubr.f32.gmra.mrb[0].mxu0 %v265
      %v388 = vpop.f32.mrb[0].mxu0
      %v389 = vadd.f32 0.0, %v388
      %v390 = vpop.f32.mrb[0].mxu0
      %391 = vmatprep.mubr.f32.mxu0 0.0
      %392 = vmatmul.mubr.f32.gmra.mrb[0].mxu0 %v268
      %v393 = vpop.f32.mrb[0].mxu0
      %v394 = vadd.f32 0.0, %v393
      %v395 = vpop.f32.mrb[0].mxu0
      %396 = vmatprep.mubr.f32.mxu0 0.0
      %397 = vmatmul.mubr.f32.gmra.mrb[0].mxu0 %v271
      %v398 = vpop.f32.mrb[0].mxu0
      %v399 = vadd.f32 0.0, %v398
      %v400 = vpop.f32.mrb[0].mxu0
      %401 = vmatprep.mubr.f32.mxu0 0.0
      %402 = vmatmul.mubr.f32.gmra.mrb[0].mxu0 %v274
      %v403 = vpop.f32.mrb[0].mxu0
      %v404 = vadd.f32 0.0, %v403
      %v405 = vpop.f32.mrb[0].mxu0
      %406 = vmatprep.mubr.f32.mxu0 0.0
      %407 = vmatmul.mubr.f32.gmra.mrb[0].mxu0 %v277
      %v408 = vpop.f32.mrb[0].mxu0
      %v409 = vadd.f32 0.0, %v408
      %v410 = vpop.f32.mrb[0].mxu0
      %411 = vmatprep.mubr.f32.mxu0 0.0
      %412 = vmatmul.mubr.f32.gmra.mrb[0].mxu0 %v280
      %v413 = vpop.f32.mrb[0].mxu0
      %v414 = vadd.f32 0.0, %v413
      %v415 = vpop.f32.mrb[0].mxu0
      %416 = vmatprep.mubr.f32.mxu0 0.0
      %417 = vmatmul.mubr.f32.gmra.mrb[0].mxu0 %v283
      %v418 = vpop.f32.mrb[0].mxu0
      %v419 = vadd.f32 0.0, %v418
      %v420 = vpop.f32.mrb[0].mxu0
      %421 = vmatprep.mubr.f32.mxu0 0.0
      %422 = vmatmul.mubr.f32.gmra.mrb[0].mxu0 %v286
      %v423 = vpop.f32.mrb[0].mxu0
      %v424 = vadd.f32 0.0, %v423
      %v425 = vpop.f32.mrb[0].mxu0
      %426 = vmatprep.mubr.f32.mxu0 0.0
      %427 = vmatmul.mubr.f32.gmra.mrb[0].mxu0 %v289
      %v428 = vpop.f32.mrb[0].mxu0
      %v429 = vadd.f32 0.0, %v428
      %v430 = vpop.f32.mrb[0].mxu0
      %431 = vmatprep.mubr.f32.mxu0 0.0
      %432 = vmatmul.mubr.f32.gmra.mrb[0].mxu0 %v292
      %v433 = vpop.f32.mrb[0].mxu0
      %v434 = vadd.f32 0.0, %v433
      %v435 = vpop.f32.mrb[0].mxu0
      %436 = vmatprep.mubr.f32.mxu0 0.0
      %437 = vmatmul.mubr.f32.gmra.mrb[0].mxu0 %v295
      %v438 = vpop.f32.mrb[0].mxu0
      %v439 = vadd.f32 0.0, %v438
      %v440 = vpop.f32.mrb[0].mxu0
      %441 = vdwg.mxu0
      %vm442 = vcmask 523264
      %443 = vst.msk [vmem:[%s214] sm:$0xff] %vm442, %v364
      %444 = vst.msk [vmem:[%s214 + $0x8] sm:$0xff] %vm442, %v369
      %445 = vst.msk [vmem:[%s214 + $0x10] sm:$0xff] %vm442, %v374
      %446 = vst.msk [vmem:[%s214 + $0x18] sm:$0xff] %vm442, %v379
      %447 = vst.msk [vmem:[%s214 + $0x20] sm:$0xff] %vm442, %v384
      %448 = vst.msk [vmem:[%s214 + $0x28] sm:$0xff] %vm442, %v389
      %449 = vst.msk [vmem:[%s214 + $0x30] sm:$0xff] %vm442, %v394
      %450 = vst.msk [vmem:[%s214 + $0x38] sm:$0xff] %vm442, %v399
      %451 = vst.msk [vmem:[%s214 + $0x40] sm:$0xff] %vm442, %v404
      %452 = vst.msk [vmem:[%s214 + $0x48] sm:$0xff] %vm442, %v409
      %453 = vst.msk [vmem:[%s214 + $0x50] sm:$0xff] %vm442, %v414
      %454 = vst.msk [vmem:[%s214 + $0x58] sm:$0xff] %vm442, %v419
      %455 = vst.msk [vmem:[%s214 + $0x60] sm:$0xff] %vm442, %v424
      %456 = vst.msk [vmem:[%s214 + $0x68] sm:$0xff] %vm442, %v429
      %457 = vst.msk [vmem:[%s214 + $0x70] sm:$0xff] %vm442, %v434
      %458 = vst.msk [vmem:[%s214 + $0x78] sm:$0xff] %vm442, %v439
      %475 = vrot.lane.b32.xlu0 %v364, 64
      %v476 = vpop.permute.xlu0 %475
      %477 = vrot.lane.b32.xlu0 %v369, 64
      %v478 = vpop.permute.xlu0 %477
      %479 = vrot.lane.b32.xlu0 %v374, 64
      %v480 = vpop.permute.xlu0 %479
      %481 = vrot.lane.b32.xlu0 %v379, 64
      %v482 = vpop.permute.xlu0 %481
      %483 = vrot.lane.b32.xlu0 %v384, 64
      %v484 = vpop.permute.xlu0 %483
      %485 = vrot.lane.b32.xlu0 %v389, 64
      %v486 = vpop.permute.xlu0 %485
      %487 = vrot.lane.b32.xlu0 %v394, 64
      %v488 = vpop.permute.xlu0 %487
      %489 = vrot.lane.b32.xlu0 %v399, 64
      %v490 = vpop.permute.xlu0 %489
      %491 = vrot.lane.b32.xlu0 %v404, 64
      %v492 = vpop.permute.xlu0 %491
      %493 = vrot.lane.b32.xlu0 %v409, 64
      %v494 = vpop.permute.xlu0 %493
      %495 = vrot.lane.b32.xlu0 %v414, 64
      %v496 = vpop.permute.xlu0 %495
      %497 = vrot.lane.b32.xlu0 %v419, 64
      %v498 = vpop.permute.xlu0 %497
      %499 = vrot.lane.b32.xlu0 %v424, 64
      %v500 = vpop.permute.xlu0 %499
      %501 = vrot.lane.b32.xlu0 %v429, 64
      %v502 = vpop.permute.xlu0 %501
      %503 = vrot.lane.b32.xlu0 %v434, 64
      %v504 = vpop.permute.xlu0 %503
      %505 = vrot.lane.b32.xlu0 %v439, 64
      %v506 = vpop.permute.xlu0 %505
      %vm523 = vcmask 31744
      %524 = vst.msk [vmem:[%s220] sm:$0xff] %vm523, %v476
      %525 = vst.msk [vmem:[%s220 + $0x8] sm:$0xff] %vm523, %v478
      %526 = vst.msk [vmem:[%s220 + $0x10] sm:$0xff] %vm523, %v480
      %527 = vst.msk [vmem:[%s220 + $0x18] sm:$0xff] %vm523, %v482
      %528 = vst.msk [vmem:[%s220 + $0x20] sm:$0xff] %vm523, %v484
      %529 = vst.msk [vmem:[%s220 + $0x28] sm:$0xff] %vm523, %v486
      %530 = vst.msk [vmem:[%s220 + $0x30] sm:$0xff] %vm523, %v488
      %531 = vst.msk [vmem:[%s220 + $0x38] sm:$0xff] %vm523, %v490
      %532 = vst.msk [vmem:[%s220 + $0x40] sm:$0xff] %vm523, %v492
      %533 = vst.msk [vmem:[%s220 + $0x48] sm:$0xff] %vm523, %v494
      %534 = vst.msk [vmem:[%s220 + $0x50] sm:$0xff] %vm523, %v496
      %535 = vst.msk [vmem:[%s220 + $0x58] sm:$0xff] %vm523, %v498
      %536 = vst.msk [vmem:[%s220 + $0x60] sm:$0xff] %vm523, %v500
      %537 = vst.msk [vmem:[%s220 + $0x68] sm:$0xff] %vm523, %v502
      %538 = vst.msk [vmem:[%s220 + $0x70] sm:$0xff] %vm523, %v504
      %539 = vst.msk [vmem:[%s220 + $0x78] sm:$0xff] %vm523, %v506
      %540 = vrot.lane.b32.xlu0 %v364, 60
      %v541 = vpop.permute.xlu0 %540
      %542 = vrot.lane.b32.xlu0 %v369, 60
      %v543 = vpop.permute.xlu0 %542
      %544 = vrot.lane.b32.xlu0 %v374, 60
      %v545 = vpop.permute.xlu0 %544
      %546 = vrot.lane.b32.xlu0 %v379, 60
      %v547 = vpop.permute.xlu0 %546
      %548 = vrot.lane.b32.xlu0 %v384, 60
      %v549 = vpop.permute.xlu0 %548
      %550 = vrot.lane.b32.xlu0 %v389, 60
      %v551 = vpop.permute.xlu0 %550
      %552 = vrot.lane.b32.xlu0 %v394, 60
      %v553 = vpop.permute.xlu0 %552
      %554 = vrot.lane.b32.xlu0 %v399, 60
      %v555 = vpop.permute.xlu0 %554
      %556 = vrot.lane.b32.xlu0 %v404, 60
      %v557 = vpop.permute.xlu0 %556
      %558 = vrot.lane.b32.xlu0 %v409, 60
      %v559 = vpop.permute.xlu0 %558
      %560 = vrot.lane.b32.xlu0 %v414, 60
      %v561 = vpop.permute.xlu0 %560
      %562 = vrot.lane.b32.xlu0 %v419, 60
      %v563 = vpop.permute.xlu0 %562
      %564 = vrot.lane.b32.xlu0 %v424, 60
      %v565 = vpop.permute.xlu0 %564
      %566 = vrot.lane.b32.xlu0 %v429, 60
      %v567 = vpop.permute.xlu0 %566
      %568 = vrot.lane.b32.xlu0 %v434, 60
      %v569 = vpop.permute.xlu0 %568
      %570 = vrot.lane.b32.xlu0 %v439, 60
      %v571 = vpop.permute.xlu0 %570
      %588 = vst.msk [vmem:[%s226] sm:$0xff] %vm523, %v541
      %589 = vst.msk [vmem:[%s226 + $0x8] sm:$0xff] %vm523, %v543
      %590 = vst.msk [vmem:[%s226 + $0x10] sm:$0xff] %vm523, %v545
      %591 = vst.msk [vmem:[%s226 + $0x18] sm:$0xff] %vm523, %v547
      %592 = vst.msk [vmem:[%s226 + $0x20] sm:$0xff] %vm523, %v549
      %593 = vst.msk [vmem:[%s226 + $0x28] sm:$0xff] %vm523, %v551
      %594 = vst.msk [vmem:[%s226 + $0x30] sm:$0xff] %vm523, %v553
      %595 = vst.msk [vmem:[%s226 + $0x38] sm:$0xff] %vm523, %v555
      %596 = vst.msk [vmem:[%s226 + $0x40] sm:$0xff] %vm523, %v557
      %597 = vst.msk [vmem:[%s226 + $0x48] sm:$0xff] %vm523, %v559
      %598 = vst.msk [vmem:[%s226 + $0x50] sm:$0xff] %vm523, %v561
      %599 = vst.msk [vmem:[%s226 + $0x58] sm:$0xff] %vm523, %v563
      %600 = vst.msk [vmem:[%s226 + $0x60] sm:$0xff] %vm523, %v565
      %601 = vst.msk [vmem:[%s226 + $0x68] sm:$0xff] %vm523, %v567
      %602 = vst.msk [vmem:[%s226 + $0x70] sm:$0xff] %vm523, %v569
      %603 = vst.msk [vmem:[%s226 + $0x78] sm:$0xff] %vm523, %v571
      %s604 = smul.u32 16, %s16
      %p605 = scmp.lt.s32.totalorder %s604, 31
      %s606 = scalar_select %p605, %s604, 31
      %s607 = smul.addr %s606, 8
      %s608 = scalar_lea.vmem %s2, %s607
      %s609 = smul.u32 16, %s16
      %p610 = scmp.lt.s32.totalorder %s609, 31
      %s611 = scalar_select %p610, %s609, 31
      %s612 = smul.addr %s611, 8
      %s613 = scalar_lea.vmem %s3, %s612
      %s614 = smul.u32 16, %s16
      %p615 = scmp.lt.s32.totalorder %s614, 31
      %s616 = scalar_select %p615, %s614, 31
      %s617 = smul.addr %s616, 8
      %s618 = scalar_lea.vmem %s4, %s617
      // Predicated region
      $region29: #{tpu_custom_call.1} parent=27 // pred_check
        %p619 = pneg %p81
      $region30: #{tpu_custom_call.1} parent=27 // pred_check_branch
        %621 = sbr.rel (%p619) target = $region32
      $region31: #{tpu_custom_call.1} parent=27 // pred_region
        %s622 = smul.u32 16, %s16
      $region32: #{tpu_custom_call.1} parent=27 // pred_fallthru
        _
      // Predicated region
      $region33: #{tpu_custom_call.1} parent=27 // pred_check
        %p623 = pneg %p107
      $region34: #{tpu_custom_call.1} parent=27 // pred_check_branch
        %625 = sbr.rel (%p623) target = $region36
      $region35: #{tpu_custom_call.1} parent=27 // pred_region
        %s626 = smul.u32 16, %s16
      $region36: #{tpu_custom_call.1} parent=27 // pred_fallthru
        _
      // Predicated region
      $region37: #{tpu_custom_call.1} parent=27 // pred_check
        %p627 = pneg %p133
      $region38: #{tpu_custom_call.1} parent=27 // pred_check_branch
        %629 = sbr.rel (%p627) target = $region40
      $region39: #{tpu_custom_call.1} parent=27 // pred_region
        %s630 = smul.u32 16, %s16
      $region40: #{tpu_custom_call.1} parent=27 // pred_fallthru
        _
    $region28: #{tpu_custom_call.1} parent=5 // pred_fallthru
      _
    %p631 = scmp.le.s32.totalorder 2, %s11
    // Predicated region
    $region41: #{tpu_custom_call.1} parent=5 // pred_check
      %p632 = pneg %p631
    $region42: #{tpu_custom_call.1} parent=5 // pred_check_branch
      %634 = sbr.rel (%p632) target = $region44
    $region43: #{tpu_custom_call.1} parent=5 // pred_region
      %s635 = ssub.s32 %s11, 2
      // Predicated region
      $region45: #{tpu_custom_call.1} parent=43 // pred_check
        %p636 = pneg %p87
      $region46: #{tpu_custom_call.1} parent=43 // pred_check_branch
        %638 = sbr.rel (%p636) target = $region48
      $region47: #{tpu_custom_call.1} parent=43 // pred_region
        %s639 = smul.u32 16, %s17
        %p640 = scmp.lt.s32.totalorder %s639, 31
        %s641 = scalar_select %p640, %s639, 31
        %s642 = smul.addr %s641, 8
        %s643 = scalar_lea.vmem %s2, %s642
      $region48: #{tpu_custom_call.1} parent=43 // pred_fallthru
        _
      // Predicated region
      $region49: #{tpu_custom_call.1} parent=43 // pred_check
        %p644 = pneg %p113
      $region50: #{tpu_custom_call.1} parent=43 // pred_check_branch
        %646 = sbr.rel (%p644) target = $region52
      $region51: #{tpu_custom_call.1} parent=43 // pred_region
        %s647 = smul.u32 16, %s17
        %p648 = scmp.lt.s32.totalorder %s647, 31
        %s649 = scalar_select %p648, %s647, 31
        %s650 = smul.addr %s649, 8
        %s651 = scalar_lea.vmem %s3, %s650
      $region52: #{tpu_custom_call.1} parent=43 // pred_fallthru
        _
      // Predicated region
      $region53: #{tpu_custom_call.1} parent=43 // pred_check
        %p652 = pneg %p139
      $region54: #{tpu_custom_call.1} parent=43 // pred_check_branch
        %654 = sbr.rel (%p652) target = $region56
      $region55: #{tpu_custom_call.1} parent=43 // pred_region
        %s655 = smul.u32 16, %s17
        %p656 = scmp.lt.s32.totalorder %s655, 31
        %s657 = scalar_select %p656, %s655, 31
        %s658 = smul.addr %s657, 8
        %s659 = scalar_lea.vmem %s4, %s658
      $region56: #{tpu_custom_call.1} parent=43 // pred_fallthru
        _
    $region44: #{tpu_custom_call.1} parent=5 // pred_fallthru
      _
  $region6: #{tpu_custom_call.1} parent=0 // loop_footer
    %s15 = sadd.s32 1, %s11
  $region7: #{tpu_custom_call.1} parent=0 // loop_footer_branch
    %10 = sbr.rel target = $region3
  $region8: #{tpu_custom_call.1} parent=0 // loop_exit
    _

</llo_original>
